<compile_context>
chip_gen: v6e
topology: v6e:2x2x1
jax: 0.10.0
libtpu: 0.0.40
codegen_flags: <defaults>
</compile_context>

<pallas_src>
import jax
import jax.numpy as jnp
from jax import lax
from jax.experimental import pallas as pl
from jax.experimental.pallas import tpu as pltpu


def task_encoder_kernel(st_ref, g_ref, w1s_ref, w1g_ref, b1_ref,
                        w2_ref, b2_ref, o_ref):
    # Linear(input_dim*2 -> 128) + ReLU, concat fused as two K=input_dim dots.
    h = (jnp.dot(st_ref[...], w1s_ref[...], preferred_element_type=jnp.float32)
         + jnp.dot(g_ref[...], w1g_ref[...], preferred_element_type=jnp.float32)
         + b1_ref[...])
    h = jnp.maximum(h, 0.0)

    # Linear(128 -> embed_dim)
    y = (jnp.dot(h.astype(w2_ref.dtype), w2_ref[...],
                 preferred_element_type=jnp.float32)
         + b2_ref[...])

    # F.normalize(y, dim=-1): y / max(||y||_2, 1e-12)
    # == y * rsqrt(max(sum(y^2), 1e-24))
    sq = jnp.sum(y * y, axis=-1, keepdims=True)
    inv = lax.rsqrt(jnp.maximum(sq, 1e-24))
    o_ref[...] = (y * inv).astype(o_ref.dtype)


def _round_up(x, m):
    return ((x + m - 1) // m) * m


def task_encoder(st, g, params, *, tb=4096, use_bf16=False):
    """st, g: [B, input_dim] float32. Returns [B, embed_dim] float32."""
    w1, b1, w2, b2 = params
    B, input_dim = st.shape
    Kin, H = w1.shape                 # (2*input_dim, 128)
    embed_dim = w2.shape[1]

    # Split W1 once so the concat can be fused inside the kernel.
    w1_st = w1[:input_dim, :]
    w1_g = w1[input_dim:, :]

    mm_dtype = jnp.bfloat16 if use_bf16 else jnp.float32
    st_in = st.astype(mm_dtype)
    g_in = g.astype(mm_dtype)
    w1_st = w1_st.astype(mm_dtype)
    w1_g = w1_g.astype(mm_dtype)
    w2_in = w2.astype(mm_dtype)
    b1_in = b1.astype(jnp.float32)
    b2_in = b2.astype(jnp.float32)

    # Batch tile: multiple of 8 (16 for bf16 sublane packing), capped so the
    # grid has >= 2 steps when B allows (both TensorCores busy on v7x), and
    # sized to stay well under scoped VMEM given 128-lane padding of blocks.
    mult = 16 if use_bf16 else 8
    tb_eff = min(tb, _round_up(B, mult))
    half = _round_up(pl.cdiv(B, 2), mult)
    tb_eff = max(mult, min(tb_eff, max(half, mult)))
    grid = (pl.cdiv(B, tb_eff),)

    out = pl.pallas_call(
        task_encoder_kernel,
        out_shape=jax.ShapeDtypeStruct((B, embed_dim), jnp.float32),
        grid=grid,
        in_specs=[
            pl.BlockSpec((tb_eff, input_dim), lambda i: (i, 0)),  # st: tiled
            pl.BlockSpec((tb_eff, input_dim), lambda i: (i, 0)),  # g:  tiled
            pl.BlockSpec((input_dim, H), lambda i: (0, 0)),       # W1_st resident
            pl.BlockSpec((input_dim, H), lambda i: (0, 0)),       # W1_g  resident
            pl.BlockSpec((1, H), lambda i: (0, 0)),               # b1    resident
            pl.BlockSpec((H, embed_dim), lambda i: (0, 0)),       # W2    resident
            pl.BlockSpec((1, embed_dim), lambda i: (0, 0)),       # b2    resident
        ],
        out_specs=pl.BlockSpec((tb_eff, embed_dim), lambda i: (i, 0)),
        compiler_params=pltpu.CompilerParams(
            dimension_semantics=("parallel",),
            vmem_limit_bytes=32 * 1024 * 1024,
        ),
    )(st_in, g_in, w1_st, w1_g, b1_in, w2_in, b2_in)

    return out


def init_params(key, input_dim=7, embed_dim=64, hidden=128):
    # Deterministic init mimicking torch.nn.Linear default: U(-1/sqrt(fan_in), +)
    k1, k2, k3, k4 = jax.random.split(key, 4)
    fan1 = input_dim * 2
    bound1 = 1.0 / jnp.sqrt(fan1)
    w1 = jax.random.uniform(k1, (fan1, hidden), jnp.float32, -bound1, bound1)
    b1 = jax.random.uniform(k2, (1, hidden), jnp.float32, -bound1, bound1)
    bound2 = 1.0 / jnp.sqrt(hidden)
    w2 = jax.random.uniform(k3, (hidden, embed_dim), jnp.float32, -bound2, bound2)
    b2 = jax.random.uniform(k4, (1, embed_dim), jnp.float32, -bound2, bound2)
    return (w1, b1, w2, b2)


def reference(st, g, params):
    w1, b1, w2, b2 = params
    x = jnp.concatenate([st, g], axis=-1)
    h = jnp.maximum(x @ w1 + b1, 0.0)
    y = h @ w2 + b2
    n = jnp.sqrt(jnp.sum(y * y, axis=-1, keepdims=True))
    return y / jnp.maximum(n, 1e-12)


if __name__ == "__main__":
    input_dim, embed_dim, B = 7, 64, 8
    key = jax.random.PRNGKey(0)
    kp, ks, kg = jax.random.split(key, 3)

    params = init_params(kp, input_dim=input_dim, embed_dim=embed_dim)
    st = jax.random.normal(ks, (B, input_dim), jnp.float32)
    g = jax.random.normal(kg, (B, input_dim), jnp.float32)

    out = task_encoder(st, g, params)
    out = jax.block_until_ready(out)

    ref = reference(st, g, params)
    assert out.shape == (B, embed_dim)
    assert jnp.allclose(out, ref, atol=1e-5, rtol=1e-5), "mismatch vs reference"
    # L2-normalized rows should have unit norm
    assert jnp.allclose(jnp.linalg.norm(out, axis=-1), 1.0, atol=1e-4)

    print("KERNEL_OK")
</pallas_src>

<mosaic_0001>
module attributes {stable_mosaic.version = 11 : i64} {
  func.func @task_encoder_kernel(%arg0: i32, %arg1: memref<8x7xf32, #tpu.memory_space<vmem>>, %arg2: memref<8x7xf32, #tpu.memory_space<vmem>>, %arg3: memref<7x128xf32, #tpu.memory_space<vmem>>, %arg4: memref<7x128xf32, #tpu.memory_space<vmem>>, %arg5: memref<1x128xf32, #tpu.memory_space<vmem>>, %arg6: memref<128x64xf32, #tpu.memory_space<vmem>>, %arg7: memref<1x64xf32, #tpu.memory_space<vmem>>, %arg8: memref<8x64xf32, #tpu.memory_space<vmem>>) attributes {dimension_semantics = [#tpu.dimension_semantics<parallel>], iteration_bounds = array<i64: 1>, scalar_prefetch = 0 : i64, scratch_operands = 0 : i64, tpu.core_type = #tpu.core_type<tc>, window_params = [{transform_indices = @transform_0, window_bounds = array<i64: 8, 7>}, {transform_indices = @transform_1, window_bounds = array<i64: 8, 7>}, {pipeline_mode = #tpu.pipeline_mode<synchronous>, transform_indices = @transform_2, window_bounds = array<i64: 7, 128>}, {pipeline_mode = #tpu.pipeline_mode<synchronous>, transform_indices = @transform_3, window_bounds = array<i64: 7, 128>}, {pipeline_mode = #tpu.pipeline_mode<synchronous>, transform_indices = @transform_4, window_bounds = array<i64: 1, 128>}, {pipeline_mode = #tpu.pipeline_mode<synchronous>, transform_indices = @transform_5, window_bounds = array<i64: 128, 64>}, {pipeline_mode = #tpu.pipeline_mode<synchronous>, transform_indices = @transform_6, window_bounds = array<i64: 1, 64>}, {transform_indices = @transform_7, window_bounds = array<i64: 8, 64>}]} {
    %c0 = arith.constant 0 : index
    %c0_0 = arith.constant 0 : index
    %0 = vector.load %arg1[%c0, %c0_0] : memref<8x7xf32, #tpu.memory_space<vmem>>, vector<8x7xf32>
    %c0_1 = arith.constant 0 : index
    %c0_2 = arith.constant 0 : index
    %1 = vector.load %arg3[%c0_1, %c0_2] : memref<7x128xf32, #tpu.memory_space<vmem>>, vector<7x128xf32>
    %cst = arith.constant dense<0.000000e+00> : vector<8x128xf32>
    %2 = tpu.matmul %0, %1, %cst {dimension_numbers = #tpu.dot_dimension_numbers<[1], [0], [0], [1], [0, 0, 1, 1], [], []>} : vector<8x7xf32>, vector<7x128xf32>, vector<8x128xf32> -> vector<8x128xf32>
    %c0_3 = arith.constant 0 : index
    %c0_4 = arith.constant 0 : index
    %3 = vector.load %arg2[%c0_3, %c0_4] : memref<8x7xf32, #tpu.memory_space<vmem>>, vector<8x7xf32>
    %c0_5 = arith.constant 0 : index
    %c0_6 = arith.constant 0 : index
    %4 = vector.load %arg4[%c0_5, %c0_6] : memref<7x128xf32, #tpu.memory_space<vmem>>, vector<7x128xf32>
    %cst_7 = arith.constant dense<0.000000e+00> : vector<8x128xf32>
    %5 = tpu.matmul %3, %4, %cst_7 {dimension_numbers = #tpu.dot_dimension_numbers<[1], [0], [0], [1], [0, 0, 1, 1], [], []>} : vector<8x7xf32>, vector<7x128xf32>, vector<8x128xf32> -> vector<8x128xf32>
    %6 = arith.addf %2, %5 : vector<8x128xf32>
    %c0_8 = arith.constant 0 : index
    %c0_9 = arith.constant 0 : index
    %7 = vector.load %arg5[%c0_8, %c0_9] : memref<1x128xf32, #tpu.memory_space<vmem>>, vector<1x128xf32>
    %8 = vector.broadcast %7 : vector<1x128xf32> to vector<8x128xf32>
    %9 = arith.addf %6, %8 : vector<8x128xf32>
    %cst_10 = arith.constant 0.000000e+00 : f32
    %10 = vector.broadcast %cst_10 : f32 to vector<8x128xf32>
    %11 = arith.maximumf %9, %10 : vector<8x128xf32>
    %c0_11 = arith.constant 0 : index
    %c0_12 = arith.constant 0 : index
    %12 = vector.load %arg6[%c0_11, %c0_12] : memref<128x64xf32, #tpu.memory_space<vmem>>, vector<128x64xf32>
    %cst_13 = arith.constant dense<0.000000e+00> : vector<8x64xf32>
    %13 = tpu.matmul %11, %12, %cst_13 {dimension_numbers = #tpu.dot_dimension_numbers<[1], [0], [0], [1], [0, 0, 1, 1], [], []>} : vector<8x128xf32>, vector<128x64xf32>, vector<8x64xf32> -> vector<8x64xf32>
    %c0_14 = arith.constant 0 : index
    %c0_15 = arith.constant 0 : index
    %14 = vector.load %arg7[%c0_14, %c0_15] : memref<1x64xf32, #tpu.memory_space<vmem>>, vector<1x64xf32>
    %15 = vector.broadcast %14 : vector<1x64xf32> to vector<8x64xf32>
    %16 = arith.addf %13, %15 : vector<8x64xf32>
    %17 = arith.mulf %16, %16 : vector<8x64xf32>
    %cst_16 = arith.constant dense<0.000000e+00> : vector<8xf32>
    %18 = vector.multi_reduction <add>, %17, %cst_16 [1] : vector<8x64xf32> to vector<8xf32>
    %19 = vector.shape_cast %18 : vector<8xf32> to vector<8x1xf32>
    %cst_17 = arith.constant 1.000000e-24 : f32
    %20 = vector.broadcast %cst_17 : f32 to vector<8x1xf32>
    %21 = arith.maximumf %19, %20 : vector<8x1xf32>
    %22 = math.rsqrt %21 : vector<8x1xf32>
    %23 = vector.broadcast %22 : vector<8x1xf32> to vector<8x64xf32>
    %24 = arith.mulf %16, %23 : vector<8x64xf32>
    %c0_18 = arith.constant 0 : index
    %c0_19 = arith.constant 0 : index
    %25 = vector.load %arg8[%c0_18, %c0_19] : memref<8x64xf32, #tpu.memory_space<vmem>>, vector<8x64xf32>
    tpu.vector_store %arg8[%c0_18, %c0_19], %24 {strides = array<i32>} : memref<8x64xf32, #tpu.memory_space<vmem>>, vector<8x64xf32>,
    return
  }
  func.func @transform_0(%arg0: i32) -> (i32, i32) {
    %c0_i32 = arith.constant 0 : i32
    %c0_i32_0 = arith.constant 0 : i32
    return %arg0, %c0_i32 : i32, i32
  }
  func.func @transform_1(%arg0: i32) -> (i32, i32) {
    %c0_i32 = arith.constant 0 : i32
    %c0_i32_0 = arith.constant 0 : i32
    return %arg0, %c0_i32 : i32, i32
  }
  func.func @transform_2(%arg0: i32) -> (i32, i32) {
    %c0_i32 = arith.constant 0 : i32
    %c0_i32_0 = arith.constant 0 : i32
    %c0_i32_1 = arith.constant 0 : i32
    return %c0_i32, %c0_i32_0 : i32, i32
  }
  func.func @transform_3(%arg0: i32) -> (i32, i32) {
    %c0_i32 = arith.constant 0 : i32
    %c0_i32_0 = arith.constant 0 : i32
    %c0_i32_1 = arith.constant 0 : i32
    return %c0_i32, %c0_i32_0 : i32, i32
  }
  func.func @transform_4(%arg0: i32) -> (i32, i32) {
    %c0_i32 = arith.constant 0 : i32
    %c0_i32_0 = arith.constant 0 : i32
    %c0_i32_1 = arith.constant 0 : i32
    return %c0_i32, %c0_i32_0 : i32, i32
  }
  func.func @transform_5(%arg0: i32) -> (i32, i32) {
    %c0_i32 = arith.constant 0 : i32
    %c0_i32_0 = arith.constant 0 : i32
    %c0_i32_1 = arith.constant 0 : i32
    return %c0_i32, %c0_i32_0 : i32, i32
  }
  func.func @transform_6(%arg0: i32) -> (i32, i32) {
    %c0_i32 = arith.constant 0 : i32
    %c0_i32_0 = arith.constant 0 : i32
    %c0_i32_1 = arith.constant 0 : i32
    return %c0_i32, %c0_i32_0 : i32, i32
  }
  func.func @transform_7(%arg0: i32) -> (i32, i32) {
    %c0_i32 = arith.constant 0 : i32
    %c0_i32_0 = arith.constant 0 : i32
    return %arg0, %c0_i32 : i32, i32
  }
}

</mosaic_0001>

<llo_original>
// kernel: tpu_custom_call.1
$region0: #{tpu_custom_call.1}
  #allocation0 [shape = 'u32[]', space=smem, size = 0x4, offset = 0x4, fixed_abs, tag = 'smem constant byte address 0x4 - core index']
  #allocation1 [shape = 'u32[144,128]{1,0:T(1,128)}', space=vmem, size = 0x12000, scoped, tag = 'internal scratch']
  %s0 = inlined_call_operand.vmem [shape: f32[8,7], index: 0, kind: input, shape index: {}]
  %s1 = inlined_call_operand.vmem [shape: f32[8,7], index: 1, kind: input, shape index: {}]
  %s2 = inlined_call_operand.vmem [shape: f32[7,128], index: 2, kind: input, shape index: {}]
  %s3 = inlined_call_operand.vmem [shape: f32[7,128], index: 3, kind: input, shape index: {}]
  %s4 = inlined_call_operand.vmem [shape: f32[1,128], index: 4, kind: input, shape index: {}]
  %s5 = inlined_call_operand.vmem [shape: f32[128,64], index: 5, kind: input, shape index: {}]
  %s6 = inlined_call_operand.vmem [shape: f32[1,64], index: 6, kind: input, shape index: {}]
  %s7 = inlined_call_operand.hbm [shape: f32[8,64], index: 7, kind: output, shape index: {}]
  %s8 = sld [smem:[#allocation0]]
  $region38: #{tpu_custom_call.1} parent=0
    _
  %s10 = ssub.s32 1, %s8
  %s11 = scalar_select 0, %s10, %s8
  $region1: #{tpu_custom_call.1} parent=0
    #allocation2 [shape = 'u8[4096]{0}', space=vmem, size = 0x1000, scoped, tag = 'output window, operand 0, single buffered']
    #allocation3 [shape = 's32[1]{0}', space=sflag, size = 0x4, scoped, tag = 'scoped memory for tpu_custom_call.1']
    %12 = vsyncpa [#allocation3], 0
    // Predicated region
    $region2: #{tpu_custom_call.1} parent=1 // pred_check
      _
    $region3: #{tpu_custom_call.1} parent=1 // pred_check_branch
      %14 = sbr.rel (0) target = $region5
    $region4: #{tpu_custom_call.1} parent=1 // pred_region
      _
    $region5: #{tpu_custom_call.1} parent=1 // pred_fallthru
      _
    // Predicated region
    $region6: #{tpu_custom_call.1} parent=1 // pred_check
      _
    $region7: #{tpu_custom_call.1} parent=1 // pred_check_branch
      %16 = sbr.rel (0) target = $region9
    $region8: #{tpu_custom_call.1} parent=1 // pred_region
      _
    $region9: #{tpu_custom_call.1} parent=1 // pred_fallthru
      _
    // Predicated region
    $region10: #{tpu_custom_call.1} parent=1 // pred_check
      _
    $region11: #{tpu_custom_call.1} parent=1 // pred_check_branch
      %18 = sbr.rel (0) target = $region13
    $region12: #{tpu_custom_call.1} parent=1 // pred_region
      _
    $region13: #{tpu_custom_call.1} parent=1 // pred_fallthru
      _
    // Predicated region
    $region14: #{tpu_custom_call.1} parent=1 // pred_check
      _
    $region15: #{tpu_custom_call.1} parent=1 // pred_check_branch
      %20 = sbr.rel (0) target = $region17
    $region16: #{tpu_custom_call.1} parent=1 // pred_region
      _
    $region17: #{tpu_custom_call.1} parent=1 // pred_fallthru
      _
    // Predicated region
    $region18: #{tpu_custom_call.1} parent=1 // pred_check
      _
    $region19: #{tpu_custom_call.1} parent=1 // pred_check_branch
      %22 = sbr.rel (0) target = $region21
    $region20: #{tpu_custom_call.1} parent=1 // pred_region
      _
    $region21: #{tpu_custom_call.1} parent=1 // pred_fallthru
      _
    // Predicated region
    $region22: #{tpu_custom_call.1} parent=1 // pred_check
      _
    $region23: #{tpu_custom_call.1} parent=1 // pred_check_branch
      %24 = sbr.rel (0) target = $region25
    $region24: #{tpu_custom_call.1} parent=1 // pred_region
      _
    $region25: #{tpu_custom_call.1} parent=1 // pred_fallthru
      _
    // Predicated region
    $region26: #{tpu_custom_call.1} parent=1 // pred_check
      _
    $region27: #{tpu_custom_call.1} parent=1 // pred_check_branch
      %26 = sbr.rel (0) target = $region29
    $region28: #{tpu_custom_call.1} parent=1 // pred_region
      _
    $region29: #{tpu_custom_call.1} parent=1 // pred_fallthru
      _
    %v27 = vld [vmem:[%s0] sm:$0xff]
    %v28 = vld [vmem:[%s2] sm:$0x7f]
    %v29 = vld [vmem:[%s1] sm:$0xff]
    %v30 = vld [vmem:[%s3] sm:$0x7f]
    %vm31 = vcmask 56320
    %v33 = vsel %vm31, %v29, 0
    %vm35 = vcmask 1046528
    %v37 = vsel %vm35, %v30, 0
    %39 = vmatprep.subr.mxu0 0.0
    %40 = vmatpush1.msra.mxu0 0.0
    %41 = vmatprep.subr.mxu0 0.0
    %42 = vmatpush1.msra.mxu0 0.0
    %43 = vmatprep.subr.mxu0 0.0
    %44 = vmatpush1.msra.mxu0 0.0
    %45 = vmatprep.subr.mxu0 0.0
    %46 = vmatpush1.msra.mxu0 0.0
    %47 = vmatprep.subr.mxu0 0.0
    %48 = vmatpush1.msra.mxu0 0.0
    %49 = vmatprep.subr.mxu0 0.0
    %50 = vmatpush1.msra.mxu0 0.0
    %51 = vmatprep.subr.mxu0 0.0
    %52 = vmatpush1.msra.mxu0 0.0
    %53 = vmatprep.subr.mxu0 0.0
    %54 = vmatpush1.msra.mxu0 0.0
    %55 = vmatprep.subr.mxu0 0.0
    %56 = vmatpush1.msra.mxu0 0.0
    %57 = vmatprep.subr.mxu0 0.0
    %58 = vmatpush1.msra.mxu0 0.0
    %59 = vmatprep.subr.mxu0 0.0
    %60 = vmatpush1.msra.mxu0 0.0
    %61 = vmatprep.subr.mxu0 0.0
    %62 = vmatpush1.msra.mxu0 0.0
    %63 = vmatprep.subr.mxu0 0.0
    %64 = vmatpush1.msra.mxu0 0.0
    %65 = vmatprep.subr.mxu0 0.0
    %66 = vmatpush1.msra.mxu0 0.0
    %67 = vmatprep.subr.mxu0 0.0
    %68 = vmatpush1.msra.mxu0 0.0
    %69 = vmatprep.subr.mxu0 0.0
    %70 = vmatpush1.msra.mxu0 %v37
    %71 = vmatprep.subr.mxu0 0.0
    %72 = vmatpush2.msra.mxu0 0.0
    %73 = vmatprep.subr.mxu0 0.0
    %74 = vmatpush2.msra.mxu0 0.0
    %75 = vmatprep.subr.mxu0 0.0
    %76 = vmatpush2.msra.mxu0 0.0
    %77 = vmatprep.subr.mxu0 0.0
    %78 = vmatpush2.msra.mxu0 0.0
    %79 = vmatprep.subr.mxu0 0.0
    %80 = vmatpush2.msra.mxu0 0.0
    %81 = vmatprep.subr.mxu0 0.0
    %82 = vmatpush2.msra.mxu0 0.0
    %83 = vmatprep.subr.mxu0 0.0
    %84 = vmatpush2.msra.mxu0 0.0
    %85 = vmatprep.subr.mxu0 0.0
    %86 = vmatpush2.msra.mxu0 0.0
    %87 = vmatprep.subr.mxu0 0.0
    %88 = vmatpush2.msra.mxu0 0.0
    %89 = vmatprep.subr.mxu0 0.0
    %90 = vmatpush2.msra.mxu0 0.0
    %91 = vmatprep.subr.mxu0 0.0
    %92 = vmatpush2.msra.mxu0 0.0
    %93 = vmatprep.subr.mxu0 0.0
    %94 = vmatpush2.msra.mxu0 0.0
    %95 = vmatprep.subr.mxu0 0.0
    %96 = vmatpush2.msra.mxu0 0.0
    %97 = vmatprep.subr.mxu0 0.0
    %98 = vmatpush2.msra.mxu0 0.0
    %99 = vmatprep.subr.mxu0 0.0
    %100 = vmatpush2.msra.mxu0 0.0
    %101 = vmatprep.subr.mxu0 0.0
    %102 = vmatpush2.msra.mxu0 0.0
    %103 = vmatprep.mubr.f32.mxu0 0.0
    %104 = vmatmul.mubr.f32.gmra.mxu0 %v33
    %v105 = vpop.f32.mrf.mxu0
    %v106 = vadd.f32 0.0, %v105
    %v107 = vpop.f32.mrf.mxu0
    %108 = vdwg.mxu0
    %v110 = vsel %vm31, %v27, 0
    %v113 = vsel %vm35, %v28, 0
    %115 = vmatprep.subr.mxu0 0.0
    %116 = vmatpush1.msra.mxu0 0.0
    %117 = vmatprep.subr.mxu0 0.0
    %118 = vmatpush1.msra.mxu0 0.0
    %119 = vmatprep.subr.mxu0 0.0
    %120 = vmatpush1.msra.mxu0 0.0
    %121 = vmatprep.subr.mxu0 0.0
    %122 = vmatpush1.msra.mxu0 0.0
    %123 = vmatprep.subr.mxu0 0.0
    %124 = vmatpush1.msra.mxu0 0.0
    %125 = vmatprep.subr.mxu0 0.0
    %126 = vmatpush1.msra.mxu0 0.0
    %127 = vmatprep.subr.mxu0 0.0
    %128 = vmatpush1.msra.mxu0 0.0
    %129 = vmatprep.subr.mxu0 0.0
    %130 = vmatpush1.msra.mxu0 0.0
    %131 = vmatprep.subr.mxu0 0.0
    %132 = vmatpush1.msra.mxu0 0.0
    %133 = vmatprep.subr.mxu0 0.0
    %134 = vmatpush1.msra.mxu0 0.0
    %135 = vmatprep.subr.mxu0 0.0
    %136 = vmatpush1.msra.mxu0 0.0
    %137 = vmatprep.subr.mxu0 0.0
    %138 = vmatpush1.msra.mxu0 0.0
    %139 = vmatprep.subr.mxu0 0.0
    %140 = vmatpush1.msra.mxu0 0.0
    %141 = vmatprep.subr.mxu0 0.0
    %142 = vmatpush1.msra.mxu0 0.0
    %143 = vmatprep.subr.mxu0 0.0
    %144 = vmatpush1.msra.mxu0 0.0
    %145 = vmatprep.subr.mxu0 0.0
    %146 = vmatpush1.msra.mxu0 %v113
    %147 = vmatprep.subr.mxu0 0.0
    %148 = vmatpush2.msra.mxu0 0.0
    %149 = vmatprep.subr.mxu0 0.0
    %150 = vmatpush2.msra.mxu0 0.0
    %151 = vmatprep.subr.mxu0 0.0
    %152 = vmatpush2.msra.mxu0 0.0
    %153 = vmatprep.subr.mxu0 0.0
    %154 = vmatpush2.msra.mxu0 0.0
    %155 = vmatprep.subr.mxu0 0.0
    %156 = vmatpush2.msra.mxu0 0.0
    %157 = vmatprep.subr.mxu0 0.0
    %158 = vmatpush2.msra.mxu0 0.0
    %159 = vmatprep.subr.mxu0 0.0
    %160 = vmatpush2.msra.mxu0 0.0
    %161 = vmatprep.subr.mxu0 0.0
    %162 = vmatpush2.msra.mxu0 0.0
    %163 = vmatprep.subr.mxu0 0.0
    %164 = vmatpush2.msra.mxu0 0.0
    %165 = vmatprep.subr.mxu0 0.0
    %166 = vmatpush2.msra.mxu0 0.0
    %167 = vmatprep.subr.mxu0 0.0
    %168 = vmatpush2.msra.mxu0 0.0
    %169 = vmatprep.subr.mxu0 0.0
    %170 = vmatpush2.msra.mxu0 0.0
    %171 = vmatprep.subr.mxu0 0.0
    %172 = vmatpush2.msra.mxu0 0.0
    %173 = vmatprep.subr.mxu0 0.0
    %174 = vmatpush2.msra.mxu0 0.0
    %175 = vmatprep.subr.mxu0 0.0
    %176 = vmatpush2.msra.mxu0 0.0
    %177 = vmatprep.subr.mxu0 0.0
    %178 = vmatpush2.msra.mxu0 0.0
    %179 = vmatprep.mubr.f32.mxu0 0.0
    %180 = vmatmul.mubr.f32.gmra.mxu0 %v110
    %v181 = vpop.f32.mrf.mxu0
    %v182 = vadd.f32 %v106, %v181
    %v183 = vpop.f32.mrf.mxu0
    %184 = vdwg.mxu0
    %v185 = vld [vmem:[%s4] sm:$0x1]
    %v187 = vlaneseq
    %v188 = vshrl.u32 %v187, 7
    %v189 = vsub.s32 0, %v188
    %v190 = vrot.slane %v185, %v189
    %v192 = vadd.f32 %v182, %v190
    %v193 = vmax.f32 %v192, 0.0
    %v194 = vld [vmem:[%s5] sm:$0xff]
    %v195 = vld [vmem:[%s5 + $0x8] sm:$0xff]
    %v196 = vld [vmem:[%s5 + $0x10] sm:$0xff]
    %v197 = vld [vmem:[%s5 + $0x18] sm:$0xff]
    %v198 = vld [vmem:[%s5 + $0x20] sm:$0xff]
    %v199 = vld [vmem:[%s5 + $0x28] sm:$0xff]
    %v200 = vld [vmem:[%s5 + $0x30] sm:$0xff]
    %v201 = vld [vmem:[%s5 + $0x38] sm:$0xff]
    %v202 = vld [vmem:[%s5 + $0x40] sm:$0xff]
    %v203 = vld [vmem:[%s5 + $0x48] sm:$0xff]
    %v204 = vld [vmem:[%s5 + $0x50] sm:$0xff]
    %v205 = vld [vmem:[%s5 + $0x58] sm:$0xff]
    %v206 = vld [vmem:[%s5 + $0x60] sm:$0xff]
    %v207 = vld [vmem:[%s5 + $0x68] sm:$0xff]
    %v208 = vld [vmem:[%s5 + $0x70] sm:$0xff]
    %v209 = vld [vmem:[%s5 + $0x78] sm:$0xff]
    %v210 = vld [vmem:[%s6] sm:$0x1]
    %v212 = vlaneseq
    %v213 = vshrl.u32 %v212, 7
    %v214 = vsub.s32 0, %v213
    %v215 = vrot.slane %v210, %v214
    %217 = vmatprep.subr.mxu0 0.0
    %218 = vmatpush1.msra.mxu0 %v209
    %219 = vmatprep.subr.mxu0 0.0
    %220 = vmatpush1.msra.mxu0 %v208
    %221 = vmatprep.subr.mxu0 0.0
    %222 = vmatpush1.msra.mxu0 %v207
    %223 = vmatprep.subr.mxu0 0.0
    %224 = vmatpush1.msra.mxu0 %v206
    %225 = vmatprep.subr.mxu0 0.0
    %226 = vmatpush1.msra.mxu0 %v205
    %227 = vmatprep.subr.mxu0 0.0
    %228 = vmatpush1.msra.mxu0 %v204
    %229 = vmatprep.subr.mxu0 0.0
    %230 = vmatpush1.msra.mxu0 %v203
    %231 = vmatprep.subr.mxu0 0.0
    %232 = vmatpush1.msra.mxu0 %v202
    %233 = vmatprep.subr.mxu0 0.0
    %234 = vmatpush1.msra.mxu0 %v201
    %235 = vmatprep.subr.mxu0 0.0
    %236 = vmatpush1.msra.mxu0 %v200
    %237 = vmatprep.subr.mxu0 0.0
    %238 = vmatpush1.msra.mxu0 %v199
    %239 = vmatprep.subr.mxu0 0.0
    %240 = vmatpush1.msra.mxu0 %v198
    %241 = vmatprep.subr.mxu0 0.0
    %242 = vmatpush1.msra.mxu0 %v197
    %243 = vmatprep.subr.mxu0 0.0
    %244 = vmatpush1.msra.mxu0 %v196
    %245 = vmatprep.subr.mxu0 0.0
    %246 = vmatpush1.msra.mxu0 %v195
    %247 = vmatprep.subr.mxu0 0.0
    %248 = vmatpush1.msra.mxu0 %v194
    %249 = vmatprep.subr.mxu0 0.0
    %250 = vmatpush2.msra.mxu0 0.0
    %251 = vmatprep.subr.mxu0 0.0
    %252 = vmatpush2.msra.mxu0 0.0
    %253 = vmatprep.subr.mxu0 0.0
    %254 = vmatpush2.msra.mxu0 0.0
    %255 = vmatprep.subr.mxu0 0.0
    %256 = vmatpush2.msra.mxu0 0.0
    %257 = vmatprep.subr.mxu0 0.0
    %258 = vmatpush2.msra.mxu0 0.0
    %259 = vmatprep.subr.mxu0 0.0
    %260 = vmatpush2.msra.mxu0 0.0
    %261 = vmatprep.subr.mxu0 0.0
    %262 = vmatpush2.msra.mxu0 0.0
    %263 = vmatprep.subr.mxu0 0.0
    %264 = vmatpush2.msra.mxu0 0.0
    %265 = vmatprep.subr.mxu0 0.0
    %266 = vmatpush2.msra.mxu0 0.0
    %267 = vmatprep.subr.mxu0 0.0
    %268 = vmatpush2.msra.mxu0 0.0
    %269 = vmatprep.subr.mxu0 0.0
    %270 = vmatpush2.msra.mxu0 0.0
    %271 = vmatprep.subr.mxu0 0.0
    %272 = vmatpush2.msra.mxu0 0.0
    %273 = vmatprep.subr.mxu0 0.0
    %274 = vmatpush2.msra.mxu0 0.0
    %275 = vmatprep.subr.mxu0 0.0
    %276 = vmatpush2.msra.mxu0 0.0
    %277 = vmatprep.subr.mxu0 0.0
    %278 = vmatpush2.msra.mxu0 0.0
    %279 = vmatprep.subr.mxu0 0.0
    %280 = vmatpush2.msra.mxu0 0.0
    %281 = vmatprep.mubr.f32.mxu0 0.0
    %282 = vmatmul.mubr.f32.gmra.mxu0 %v193
    %v283 = vpop.f32.mrf.mxu0
    %v284 = vadd.f32 %v215, %v283
    %v285 = vpop.f32.mrf.mxu0
    %286 = vdwg.mxu0
    %v287 = vmul.f32 %v284, %v284
    %vm288 = vcmask 523264
    %v289 = vsel %vm288, %v287, 0.0
    %290 = vadd.xlane.f32.xlu0 %v289
    %v291 = vpop.xlane.xlu0 %290
    %v292 = vmax.f32 %v291, 1e-24
    %v293 = vrsqrt.pop %v292
    %v294 = vmul.f32 %v284, %v293
    %295 = vst.msk [vmem:[#allocation2] sm:$0xff] %vm288, %v294
    // Predicated region
    $region30: #{tpu_custom_call.1} parent=1 // pred_check
      _
    $region31: #{tpu_custom_call.1} parent=1 // pred_check_branch
      %297 = sbr.rel (0) target = $region33
    $region32: #{tpu_custom_call.1} parent=1 // pred_region
      %s299 = ssub.s32 128, 128
      %300 = vsyncadd [#allocation3], %s299
      %s302 = sshll.u32 [#allocation2], 4
      %s303 = int_to_ptr.vmem [resolvable:$true] %s302
      %305 = dma.vmem_to_hbm [thread:$0]  %s303, 128, %s7, [#allocation3]
    $region33: #{tpu_custom_call.1} parent=1 // pred_fallthru
      _
    // Predicated region
    $region34: #{tpu_custom_call.1} parent=1 // pred_check
      _
    $region35: #{tpu_custom_call.1} parent=1 // pred_check_branch
      %307 = sbr.rel (0) target = $region37
    $region36: #{tpu_custom_call.1} parent=1 // pred_region
      %308 = dma.done [#allocation3], 128
    $region37: #{tpu_custom_call.1} parent=1 // pred_fallthru
      _
    %309 = vsyncpa [#allocation3], 1

</llo_original>
